<compile_context>
chip_gen: v6e
topology: v6e:2x2x1
jax: 0.10.0
libtpu: 0.0.40
codegen_flags: <defaults>
</compile_context>

<pallas_src>
import jax
import jax.numpy as jnp
from jax.experimental import pallas as pl
from jax.experimental.pallas import tpu as pltpu

_LANES = 128
_SUBLANES = 8
# Conservative budget: ample headroom inside v7x's 64 MiB physical VMEM and far
# under v5e/v6e's 128 MiB.
_VMEM_BUDGET = 40 * 1024 * 1024


def _round_up(x, m):
    return ((x + m - 1) // m) * m


def _linear_kernel(x_ref, w_ref, b_ref, o_ref, acc_ref):
    """One (batch-tile, K-tile) grid step of  y = x @ w + b.

    x_ref:   [tb, tk]  matmul dtype (f32 or bf16)
    w_ref:   [tk, C]   matmul dtype (weight already transposed in wrapper)
    b_ref:   [1,  C]   f32
    o_ref:   [tb, C]   output dtype
    acc_ref: [tb, C]   f32 scratch accumulator (persists across the K axis)
    """
    k = pl.program_id(1)

    @pl.when(k == 0)
    def _():
        acc_ref[...] = jnp.zeros_like(acc_ref)

    # Default matmul precision; for bit-exact f32 accumulation at large H pass
    # precision=lax.Precision.HIGHEST (extra MXU passes; irrelevant here since
    # the kernel is memory-bound).
    acc_ref[...] += jnp.dot(
        x_ref[...], w_ref[...], preferred_element_type=jnp.float32
    )

    @pl.when(k == pl.num_programs(1) - 1)
    def _():
        o_ref[...] = (acc_ref[...] + b_ref[...]).astype(o_ref.dtype)


def rnn_classifier_forward(x, weight, bias, *, use_bf16_matmul=False,
                           tile_b=512, out_dtype=None):
    """Equivalent of `self.fc(x)` for fc = nn.Linear(hidden_dims, num_classes).

    x:      [B, H]  float32
    weight: [C, H]  float32  (PyTorch convention: [out_features, in_features])
    bias:   [C]     float32
    returns [B, C]  out_dtype (default: x.dtype)
    """
    B, H = x.shape
    C, H_w = weight.shape
    assert H_w == H and bias.shape == (C,)

    out_dtype = out_dtype or x.dtype
    mm_dtype = jnp.bfloat16 if use_bf16_matmul else x.dtype
    isz = jnp.dtype(mm_dtype).itemsize
    out_isz = jnp.dtype(out_dtype).itemsize

    # One-time wrapper-side prep (amortized over all grid steps):
    #  - transpose the small weight to [H, C] so the kernel needs no transpose
    #  - cast streamed operands to the matmul dtype (halves HBM traffic in the
    #    bf16 path); bias stays f32 for the f32 accumulate + add.
    w_t = weight.T.astype(mm_dtype)               # [H, C]
    x_mm = x.astype(mm_dtype)                     # [B, H]
    b2 = bias.astype(jnp.float32).reshape(1, C)   # [1, C]

    # ---- K (hidden-dim) tiling --------------------------------------------
    # Single K block while the resident weight slab is comfortably small;
    # otherwise tile K and zero-pad H so every K block is full (zero rows/cols
    # contribute nothing to the accumulation).
    if 2 * H * C * isz <= _VMEM_BUDGET // 2 and H <= 8192:
        tk, Hp = H, H
    else:
        tk = 512
        Hp = _round_up(H, tk)
    if Hp != H:
        x_mm = jnp.pad(x_mm, ((0, 0), (0, Hp - H)))
        w_t = jnp.pad(w_t, ((0, Hp - H), (0, 0)))
    nk = Hp // tk

    # ---- batch tiling -------------------------------------------------------
    # Per-batch-row VMEM: double-buffered x tile + double-buffered out + f32 acc.
    row_bytes = 2 * tk * isz + 2 * C * out_isz + 4 * C
    # Weight tile (double-buffered) + bias.
    resident_bytes = 2 * tk * C * isz + 2 * _round_up(C, _LANES) * 4
    tb_vmem = max(_SUBLANES, (_VMEM_BUDGET - resident_bytes) // max(row_bytes, 1))

    if B <= 64:
        tb = B                       # single batch block; too small to split
    else:
        # >= 2 batch grid steps so the "parallel" axis can use both v7x TCs.
        tb = min(tile_b, _round_up((B + 1) // 2, _SUBLANES), tb_vmem)
        tb = max(_SUBLANES, (tb // _SUBLANES) * _SUBLANES)
    nb = pl.cdiv(B, tb)

    vmem_need = resident_bytes + tb * row_bytes
    vmem_limit = int(min(max(vmem_need + (4 << 20), 32 << 20), 56 << 20))

    cost = pl.CostEstimate(
        flops=2 * B * Hp * C,
        transcendentals=0,
        bytes_accessed=(B * Hp * isz + Hp * C * isz + C * 4 + B * C * out_isz),
    )

    out = pl.pallas_call(
        _linear_kernel,
        out_shape=jax.ShapeDtypeStruct((B, C), out_dtype),
        grid=(nb, nk),
        in_specs=[
            pl.BlockSpec((tb, tk), lambda i, k: (i, k)),   # x: streamed per step
            pl.BlockSpec((tk, C), lambda i, k: (k, 0)),    # w^T: per-K-tile
            pl.BlockSpec((1, C), lambda i, k: (0, 0)),     # bias: resident
        ],
        out_specs=pl.BlockSpec((tb, C), lambda i, k: (i, 0)),
        scratch_shapes=[pltpu.VMEM((tb, C), jnp.float32)],
        compiler_params=pltpu.CompilerParams(
            dimension_semantics=("parallel", "arbitrary"),
            vmem_limit_bytes=vmem_limit,
        ),
        cost_estimate=cost,
    )(x_mm, w_t, b2)

    return out


def _reference(x, weight, bias):
    return x @ weight.T + bias


if __name__ == "__main__":
    # Small shapes consistent with the module: batch=8, hidden_dims=32, classes=16.
    B, H, C = 8, 32, 16

    key = jax.random.PRNGKey(0)
    kx, kw, kb = jax.random.split(key, 3)

    # Deterministic init mimicking nn.Linear's uniform(-1/sqrt(H), 1/sqrt(H)).
    bound = 1.0 / (H ** 0.5)
    weight = jax.random.uniform(kw, (C, H), jnp.float32, minval=-bound, maxval=bound)
    bias = jax.random.uniform(kb, (C,), jnp.float32, minval=-bound, maxval=bound)
    x = jax.random.normal(kx, (B, H), jnp.float32)

    ref = _reference(x, weight, bias)

    # f32 path (default).
    out = rnn_classifier_forward(x, weight, bias)
    out = jax.block_until_ready(out)
    assert out.shape == (B, C)
    assert jnp.allclose(out, ref, atol=1e-5, rtol=1e-5), "f32 mismatch vs reference"

    # bf16-operand fast path (wrapper-side casts; f32 accumulation).
    out_bf16 = rnn_classifier_forward(x, weight, bias, use_bf16_matmul=True)
    out_bf16 = jax.block_until_ready(out_bf16)
    assert out_bf16.shape == (B, C)
    assert jnp.allclose(out_bf16, ref, atol=3e-2, rtol=3e-2), "bf16 mismatch vs reference"

    print("KERNEL_OK")
</pallas_src>

<mosaic_0001>
module attributes {stable_mosaic.version = 11 : i64} {
  func.func @_linear_kernel(%arg0: i32, %arg1: i32, %arg2: memref<8x32xf32, #tpu.memory_space<vmem>>, %arg3: memref<32x16xf32, #tpu.memory_space<vmem>>, %arg4: memref<1x16xf32, #tpu.memory_space<vmem>>, %arg5: memref<8x16xf32, #tpu.memory_space<vmem>>, %arg6: memref<8x16xf32, #tpu.memory_space<vmem>>) attributes {dimension_semantics = [#tpu.dimension_semantics<parallel>, #tpu.dimension_semantics<arbitrary>], iteration_bounds = array<i64: 1, 1>, scalar_prefetch = 0 : i64, scratch_operands = 1 : i64, tpu.core_type = #tpu.core_type<tc>, window_params = [{transform_indices = @transform_0, window_bounds = array<i64: 8, 32>}, {transform_indices = @transform_1, window_bounds = array<i64: 32, 16>}, {pipeline_mode = #tpu.pipeline_mode<synchronous>, transform_indices = @transform_2, window_bounds = array<i64: 1, 16>}, {transform_indices = @transform_3, window_bounds = array<i64: 8, 16>}]} {
    %c0_i32 = arith.constant 0 : i32
    %0 = arith.cmpi eq, %arg1, %c0_i32 : i32
    %1 = arith.extui %0 : i1 to i32
    %c0_i32_0 = arith.constant 0 : i32
    %2 = arith.cmpi ne, %1, %c0_i32_0 : i32
    scf.if %2 {
      %cst_10 = arith.constant 0.000000e+00 : f32
      %12 = vector.broadcast %cst_10 : f32 to vector<8x16xf32>
      %c0_11 = arith.constant 0 : index
      %c0_12 = arith.constant 0 : index
      %13 = vector.load %arg6[%c0_11, %c0_12] : memref<8x16xf32, #tpu.memory_space<vmem>>, vector<8x16xf32>
      tpu.vector_store %arg6[%c0_11, %c0_12], %12 {strides = array<i32>} : memref<8x16xf32, #tpu.memory_space<vmem>>, vector<8x16xf32>,
    } else {
    }
    %c0 = arith.constant 0 : index
    %c0_1 = arith.constant 0 : index
    %3 = vector.load %arg6[%c0, %c0_1] : memref<8x16xf32, #tpu.memory_space<vmem>>, vector<8x16xf32>
    %c0_2 = arith.constant 0 : index
    %c0_3 = arith.constant 0 : index
    %4 = vector.load %arg2[%c0_2, %c0_3] : memref<8x32xf32, #tpu.memory_space<vmem>>, vector<8x32xf32>
    %c0_4 = arith.constant 0 : index
    %c0_5 = arith.constant 0 : index
    %5 = vector.load %arg3[%c0_4, %c0_5] : memref<32x16xf32, #tpu.memory_space<vmem>>, vector<32x16xf32>
    %cst = arith.constant dense<0.000000e+00> : vector<8x16xf32>
    %6 = tpu.matmul %4, %5, %cst {dimension_numbers = #tpu.dot_dimension_numbers<[1], [0], [0], [1], [0, 0, 1, 1], [], []>} : vector<8x32xf32>, vector<32x16xf32>, vector<8x16xf32> -> vector<8x16xf32>
    %7 = arith.addf %3, %6 : vector<8x16xf32>
    %c0_6 = arith.constant 0 : index
    %c0_7 = arith.constant 0 : index
    %8 = vector.load %arg6[%c0_6, %c0_7] : memref<8x16xf32, #tpu.memory_space<vmem>>, vector<8x16xf32>
    tpu.vector_store %arg6[%c0_6, %c0_7], %7 {strides = array<i32>} : memref<8x16xf32, #tpu.memory_space<vmem>>, vector<8x16xf32>,
    %c0_i32_8 = arith.constant 0 : i32
    %9 = arith.cmpi eq, %arg1, %c0_i32_8 : i32
    %10 = arith.extui %9 : i1 to i32
    %c0_i32_9 = arith.constant 0 : i32
    %11 = arith.cmpi ne, %10, %c0_i32_9 : i32
    scf.if %11 {
      %c0_10 = arith.constant 0 : index
      %c0_11 = arith.constant 0 : index
      %12 = vector.load %arg6[%c0_10, %c0_11] : memref<8x16xf32, #tpu.memory_space<vmem>>, vector<8x16xf32>
      %c0_12 = arith.constant 0 : index
      %c0_13 = arith.constant 0 : index
      %13 = vector.load %arg4[%c0_12, %c0_13] : memref<1x16xf32, #tpu.memory_space<vmem>>, vector<1x16xf32>
      %14 = vector.broadcast %13 : vector<1x16xf32> to vector<8x16xf32>
      %15 = arith.addf %12, %14 : vector<8x16xf32>
      %c0_14 = arith.constant 0 : index
      %c0_15 = arith.constant 0 : index
      %16 = vector.load %arg5[%c0_14, %c0_15] : memref<8x16xf32, #tpu.memory_space<vmem>>, vector<8x16xf32>
      tpu.vector_store %arg5[%c0_14, %c0_15], %15 {strides = array<i32>} : memref<8x16xf32, #tpu.memory_space<vmem>>, vector<8x16xf32>,
    } else {
    }
    return
  }
  func.func @transform_0(%arg0: i32, %arg1: i32) -> (i32, i32) {
    %c0_i32 = arith.constant 0 : i32
    return %arg0, %arg1 : i32, i32
  }
  func.func @transform_1(%arg0: i32, %arg1: i32) -> (i32, i32) {
    %c0_i32 = arith.constant 0 : i32
    %c0_i32_0 = arith.constant 0 : i32
    return %arg1, %c0_i32 : i32, i32
  }
  func.func @transform_2(%arg0: i32, %arg1: i32) -> (i32, i32) {
    %c0_i32 = arith.constant 0 : i32
    %c0_i32_0 = arith.constant 0 : i32
    %c0_i32_1 = arith.constant 0 : i32
    return %c0_i32, %c0_i32_0 : i32, i32
  }
  func.func @transform_3(%arg0: i32, %arg1: i32) -> (i32, i32) {
    %c0_i32 = arith.constant 0 : i32
    %c0_i32_0 = arith.constant 0 : i32
    return %arg0, %c0_i32 : i32, i32
  }
}

</mosaic_0001>

<llo_original>
// kernel: tpu_custom_call.1
$region0: #{tpu_custom_call.1}
  #allocation0 [shape = 'u32[]', space=smem, size = 0x4, offset = 0x4, fixed_abs, tag = 'smem constant byte address 0x4 - core index']
  #allocation1 [shape = 'u32[144,128]{1,0:T(1,128)}', space=vmem, size = 0x12000, scoped, tag = 'internal scratch']
  #allocation2 [shape = 'f32[8,16]{1,0:T(8,128)}', space=vmem, size = 0x1000, scoped, tag = 'scratch operand']
  %s0 = inlined_call_operand.vmem [shape: f32[8,32], index: 0, kind: input, shape index: {}]
  %s1 = inlined_call_operand.vmem [shape: f32[32,16], index: 1, kind: input, shape index: {}]
  %s2 = inlined_call_operand.vmem [shape: f32[1,16], index: 2, kind: input, shape index: {}]
  %s3 = inlined_call_operand.hbm [shape: f32[8,16], index: 3, kind: output, shape index: {}]
  %s4 = sld [smem:[#allocation0]]
  $region30: #{tpu_custom_call.1} parent=0
    _
  %s6 = ssub.s32 1, %s4
  %s7 = scalar_select 0, %s6, %s4
  $region1: #{tpu_custom_call.1} parent=0
    #allocation3 [shape = 'u8[4096]{0}', space=vmem, size = 0x1000, scoped, tag = 'output window, operand 0, single buffered']
    #allocation4 [shape = 's32[1]{0}', space=sflag, size = 0x4, scoped, tag = 'scoped memory for tpu_custom_call.1']
    %8 = vsyncpa [#allocation4], 0
    // Predicated region
    $region2: #{tpu_custom_call.1} parent=1 // pred_check
      _
    $region3: #{tpu_custom_call.1} parent=1 // pred_check_branch
      %10 = sbr.rel (0) target = $region5
    $region4: #{tpu_custom_call.1} parent=1 // pred_region
      _
    $region5: #{tpu_custom_call.1} parent=1 // pred_fallthru
      _
    // Predicated region
    $region6: #{tpu_custom_call.1} parent=1 // pred_check
      _
    $region7: #{tpu_custom_call.1} parent=1 // pred_check_branch
      %12 = sbr.rel (0) target = $region9
    $region8: #{tpu_custom_call.1} parent=1 // pred_region
      _
    $region9: #{tpu_custom_call.1} parent=1 // pred_fallthru
      _
    // Predicated region
    $region10: #{tpu_custom_call.1} parent=1 // pred_check
      _
    $region11: #{tpu_custom_call.1} parent=1 // pred_check_branch
      %14 = sbr.rel (0) target = $region13
    $region12: #{tpu_custom_call.1} parent=1 // pred_region
      _
    $region13: #{tpu_custom_call.1} parent=1 // pred_fallthru
      _
    %p15 = scmp.eq.s32.totalorder 0, 0
    // Predicated region
    $region14: #{tpu_custom_call.1} parent=1 // pred_check
      %p16 = pneg %p15
    $region15: #{tpu_custom_call.1} parent=1 // pred_check_branch
      %18 = sbr.rel (%p16) target = $region17
    $region16: #{tpu_custom_call.1} parent=1 // pred_region
      %vm19 = vcmask 130048
      %20 = vst.msk [vmem:[#allocation2] sm:$0xff] %vm19, 0.0
    $region17: #{tpu_custom_call.1} parent=1 // pred_fallthru
      _
    %v21 = vld [vmem:[#allocation2] sm:$0xff]
    %v22 = vld [vmem:[%s0] sm:$0xff]
    %v23 = vld [vmem:[%s1] sm:$0xff]
    %v24 = vld [vmem:[%s1 + $0x8] sm:$0xff]
    %v25 = vld [vmem:[%s1 + $0x10] sm:$0xff]
    %v26 = vld [vmem:[%s1 + $0x18] sm:$0xff]
    %vm27 = vcmask 261120
    %v29 = vsel %vm27, %v22, 0
    %31 = vmatprep.subr.mxu0 0.0
    %32 = vmatpush1.msra.mxu0 0.0
    %33 = vmatprep.subr.mxu0 0.0
    %34 = vmatpush1.msra.mxu0 0.0
    %35 = vmatprep.subr.mxu0 0.0
    %36 = vmatpush1.msra.mxu0 0.0
    %37 = vmatprep.subr.mxu0 0.0
    %38 = vmatpush1.msra.mxu0 0.0
    %39 = vmatprep.subr.mxu0 0.0
    %40 = vmatpush1.msra.mxu0 0.0
    %41 = vmatprep.subr.mxu0 0.0
    %42 = vmatpush1.msra.mxu0 0.0
    %43 = vmatprep.subr.mxu0 0.0
    %44 = vmatpush1.msra.mxu0 0.0
    %45 = vmatprep.subr.mxu0 0.0
    %46 = vmatpush1.msra.mxu0 0.0
    %47 = vmatprep.subr.mxu0 0.0
    %48 = vmatpush1.msra.mxu0 0.0
    %49 = vmatprep.subr.mxu0 0.0
    %50 = vmatpush1.msra.mxu0 0.0
    %51 = vmatprep.subr.mxu0 0.0
    %52 = vmatpush1.msra.mxu0 0.0
    %53 = vmatprep.subr.mxu0 0.0
    %54 = vmatpush1.msra.mxu0 0.0
    %55 = vmatprep.subr.mxu0 0.0
    %56 = vmatpush1.msra.mxu0 %v26
    %57 = vmatprep.subr.mxu0 0.0
    %58 = vmatpush1.msra.mxu0 %v25
    %59 = vmatprep.subr.mxu0 0.0
    %60 = vmatpush1.msra.mxu0 %v24
    %61 = vmatprep.subr.mxu0 0.0
    %62 = vmatpush1.msra.mxu0 %v23
    %63 = vmatprep.subr.mxu0 0.0
    %64 = vmatpush2.msra.mxu0 0.0
    %65 = vmatprep.subr.mxu0 0.0
    %66 = vmatpush2.msra.mxu0 0.0
    %67 = vmatprep.subr.mxu0 0.0
    %68 = vmatpush2.msra.mxu0 0.0
    %69 = vmatprep.subr.mxu0 0.0
    %70 = vmatpush2.msra.mxu0 0.0
    %71 = vmatprep.subr.mxu0 0.0
    %72 = vmatpush2.msra.mxu0 0.0
    %73 = vmatprep.subr.mxu0 0.0
    %74 = vmatpush2.msra.mxu0 0.0
    %75 = vmatprep.subr.mxu0 0.0
    %76 = vmatpush2.msra.mxu0 0.0
    %77 = vmatprep.subr.mxu0 0.0
    %78 = vmatpush2.msra.mxu0 0.0
    %79 = vmatprep.subr.mxu0 0.0
    %80 = vmatpush2.msra.mxu0 0.0
    %81 = vmatprep.subr.mxu0 0.0
    %82 = vmatpush2.msra.mxu0 0.0
    %83 = vmatprep.subr.mxu0 0.0
    %84 = vmatpush2.msra.mxu0 0.0
    %85 = vmatprep.subr.mxu0 0.0
    %86 = vmatpush2.msra.mxu0 0.0
    %87 = vmatprep.subr.mxu0 0.0
    %88 = vmatpush2.msra.mxu0 0.0
    %89 = vmatprep.subr.mxu0 0.0
    %90 = vmatpush2.msra.mxu0 0.0
    %91 = vmatprep.subr.mxu0 0.0
    %92 = vmatpush2.msra.mxu0 0.0
    %93 = vmatprep.subr.mxu0 0.0
    %94 = vmatpush2.msra.mxu0 0.0
    %95 = vmatprep.mubr.f32.mxu0 0.0
    %96 = vmatmul.mubr.f32.gmra.mxu0 %v29
    %v97 = vpop.f32.mrf.mxu0
    %v98 = vadd.f32 0.0, %v97
    %v99 = vpop.f32.mrf.mxu0
    %100 = vdwg.mxu0
    %v101 = vadd.f32 %v21, %v98
    %vm102 = vcmask 130048
    %103 = vst.msk [vmem:[#allocation2] sm:$0xff] %vm102, %v101
    // Predicated region
    $region18: #{tpu_custom_call.1} parent=1 // pred_check
      %p104 = pneg %p15
    $region19: #{tpu_custom_call.1} parent=1 // pred_check_branch
      %106 = sbr.rel (%p104) target = $region21
    $region20: #{tpu_custom_call.1} parent=1 // pred_region
      %v107 = vld [vmem:[#allocation2] sm:$0xff]
      %v108 = vld [vmem:[%s2] sm:$0x1]
      %v110 = vlaneseq
      %v111 = vshrl.u32 %v110, 7
      %v112 = vsub.s32 0, %v111
      %v113 = vrot.slane %v108, %v112
      %v115 = vadd.f32 %v107, %v113
      %116 = vst.msk [vmem:[#allocation3] sm:$0xff] %vm102, %v115
    $region21: #{tpu_custom_call.1} parent=1 // pred_fallthru
      _
    // Predicated region
    $region22: #{tpu_custom_call.1} parent=1 // pred_check
      _
    $region23: #{tpu_custom_call.1} parent=1 // pred_check_branch
      %118 = sbr.rel (0) target = $region25
    $region24: #{tpu_custom_call.1} parent=1 // pred_region
      %s120 = ssub.s32 128, 128
      %121 = vsyncadd [#allocation4], %s120
      %s123 = sshll.u32 [#allocation3], 4
      %s124 = int_to_ptr.vmem [resolvable:$true] %s123
      %126 = dma.vmem_to_hbm [thread:$0]  %s124, 128, %s3, [#allocation4]
    $region25: #{tpu_custom_call.1} parent=1 // pred_fallthru
      _
    // Predicated region
    $region26: #{tpu_custom_call.1} parent=1 // pred_check
      _
    $region27: #{tpu_custom_call.1} parent=1 // pred_check_branch
      %128 = sbr.rel (0) target = $region29
    $region28: #{tpu_custom_call.1} parent=1 // pred_region
      %129 = dma.done [#allocation4], 128
    $region29: #{tpu_custom_call.1} parent=1 // pred_fallthru
      _
    %130 = vsyncpa [#allocation4], 1

</llo_original>
